<compile_context>
chip_gen: v5e
topology: v5e:2x2
jax: 0.10.0
libtpu: 0.0.40
codegen_flags: <defaults>
</compile_context>

<pallas_src>
import jax
import jax.numpy as jnp
from jax import lax
from jax.experimental import pallas as pl
from jax.experimental.pallas import tpu as pltpu
import numpy as np

# ---- deterministic, synthetic LFQ config (module __init__) ----
DIM = 8                     # feature dim == e_dim (no projections)
N_E = 2 ** DIM              # codebook size
E_DIM = DIM
NUM_CODEBOOKS = 1
BETA = 0.25
ENTROPY_LOSS_RATIO = 0.1
SAMPLE_MIN_W = 1.0
BATCH_MAX_W = 1.0
TEMPERATURE = 0.01
EPS = 1e-5

MAX_T_TILE = 2048           # max tokens per grid step (VMEM-safe incl. v7x)
PRE_BITS = 3                # bits built at an aligned (8, TT) shape


def _lfq_kernel(z_ref, q_ref, idx_ref, part_ref):
    # z block: (1, D, TT) in native dtype; cast on the VPU after the DMA.
    z = z_ref[0].astype(jnp.float32)                         # (D, TT)
    tt = z.shape[1]
    pos = z > 0

    # --- quantize: sign(z) in {-1, +1}; stored in the input dtype ---
    q = jnp.where(pos, 1.0, -1.0)                            # (D, TT) f32
    q_ref[0] = q.astype(q_ref.dtype)

    # --- indices: sum_d bit_d * 2^d (little-endian), weights baked constants ---
    idx = pos[0:1, :].astype(jnp.int32)
    for dd in range(1, E_DIM):
        idx = idx + pos[dd:dd + 1, :].astype(jnp.int32) * (1 << dd)
    idx_ref[0] = idx                                         # (1, TT)

    # --- factorized entropy path (codebook = all sign patterns) ---
    # logits_c / tau = (2/tau) * sum_d s_cd * z_d,  s_cd in {-1,+1}
    #   => softmax over codes factorizes: p(+1 on dim d) = sigmoid(4*z_d/tau).
    a_abs = jnp.abs(z) * (4.0 / TEMPERATURE)                 # |a|, (D, TT)
    t = jnp.exp(-a_abs)                                      # in (0, 1], D*TT exps only
    p_lo = t / (1.0 + t)                                     # prob of non-dominant sign
    # Per-dim Bernoulli entropy, stable when sigmoid saturates:
    #   H_d = log(1+t) + |a| * t/(1+t)    (== -p*log p - (1-p)*log(1-p))
    h_d = jnp.log(1.0 + t) + a_abs * p_lo
    ent_p = jnp.sum(h_d, keepdims=True)                      # (1, 1) sample-entropy sum
    sse_p = jnp.sum((z - q) * (z - q), keepdims=True)        # (1, 1) commit-loss SSE

    sig = jnp.where(pos, 1.0 - p_lo, p_lo)                   # prob of +1 per dim, (D, TT)

    # Per-code probs via Kronecker doubling (bit d of code index <-> dim d):
    # first PRE_BITS bits at an aligned (8, TT) shape, then sublane-aligned
    # doubling 16 -> 32 -> ... -> 256.  Pure VPU multiplies, no exp, no matmul.
    code8 = lax.broadcasted_iota(jnp.int32, (1 << PRE_BITS, tt), 0)
    probs = jnp.ones((1 << PRE_BITS, tt), jnp.float32)
    for dd in range(PRE_BITS):
        bit_set = ((code8 >> dd) & 1) == 1
        s_row = sig[dd:dd + 1, :]
        probs = probs * jnp.where(bit_set, s_row, 1.0 - s_row)
    for dd in range(PRE_BITS, E_DIM):
        s_row = sig[dd:dd + 1, :]
        probs = jnp.concatenate([probs * (1.0 - s_row), probs * s_row], axis=0)
    # probs: (N_E, TT); sum over tokens -> per-tile partial of avg_probs
    psum_col = jnp.sum(probs, axis=1, keepdims=True)         # (N_E, 1)

    # --- single packed partial output per tile: [psum(256); ent; sse; 0...] ---
    sub = lax.broadcasted_iota(jnp.int32, (8, 1), 0)
    tail = jnp.where(sub == 0, ent_p, jnp.where(sub == 1, sse_p, 0.0))  # (8, 1)
    part_ref[0, 0] = jnp.concatenate([psum_col, tail], axis=0)          # (N_E+8, 1)


def build_codebook():
    codes = np.arange(N_E)
    bitmask = 2 ** np.arange(E_DIM)
    bits = (codes[:, None] & bitmask) != 0
    return jnp.asarray(bits * 2.0 - 1.0, dtype=jnp.float32)  # (N_E, E_DIM)


def _pick_t_tile(hw):
    if hw <= MAX_T_TILE:
        return hw                       # full-extent block is always legal
    for cand in (MAX_T_TILE, 1024, 512, 256, 128):
        if hw % cand == 0:
            return cand
    # TODO(synk): no masking path for ragged h*w; require a 128-multiple tile.
    raise ValueError(f"h*w={hw} must be a multiple of 128 when > {MAX_T_TILE}")


def lfq_forward(z_nchw):
    b, d, h, w = z_nchw.shape
    assert d == E_DIM * NUM_CODEBOOKS
    hw = h * w
    T = b * hw
    t_tile = _pick_t_tile(hw)
    n_tiles = hw // t_tile

    # native layout, free reshape: tokens keep 'b (h w)' order -> indices match
    z_bdt = z_nchw.reshape(b, d, hw)

    q_bdt, idx_bt, parts = pl.pallas_call(
        _lfq_kernel,
        out_shape=(
            jax.ShapeDtypeStruct((b, d, hw), z_nchw.dtype),
            jax.ShapeDtypeStruct((b, 1, hw), jnp.int32),
            jax.ShapeDtypeStruct((b, n_tiles, N_E + 8, 1), jnp.float32),
        ),
        grid_spec=pltpu.PrefetchScalarGridSpec(
            num_scalar_prefetch=0,
            grid=(b, n_tiles),
            in_specs=[
                pl.BlockSpec((1, d, t_tile), lambda bi, ti: (bi, 0, ti)),
            ],
            out_specs=[
                pl.BlockSpec((1, d, t_tile), lambda bi, ti: (bi, 0, ti)),
                pl.BlockSpec((1, 1, t_tile), lambda bi, ti: (bi, 0, ti)),
                pl.BlockSpec((1, 1, N_E + 8, 1), lambda bi, ti: (bi, ti, 0, 0)),
            ],
        ),
        compiler_params=pltpu.CompilerParams(
            # per-tile partials carry no state -> both axes shardable (v7x megacore)
            dimension_semantics=("parallel", "parallel")),
    )(z_bdt)

    # --- glue: finalize the scalar losses (tiny reductions) ---
    psum = jnp.sum(parts[:, :, :N_E, 0], axis=(0, 1))                 # (N_E,)
    ent_sum = jnp.sum(parts[:, :, N_E, 0])
    sse_sum = jnp.sum(parts[:, :, N_E + 1, 0])

    avg_probs = psum / T
    avg_entropy = -jnp.sum(avg_probs * jnp.log(avg_probs + EPS))
    sample_entropy = ent_sum / T
    ent_loss = SAMPLE_MIN_W * sample_entropy - BATCH_MAX_W * avg_entropy
    entropy_aux_loss = (ENTROPY_LOSS_RATIO * ent_loss
                        if ENTROPY_LOSS_RATIO > 0 else jnp.float32(0.0))
    commit_loss = BETA * sse_sum / (T * d)

    # quantized = z + (quantized - z).detach()  -> forward value is `quantized`
    quantized_nchw = q_bdt.reshape(b, d, h, w)
    indices = idx_bt.reshape(-1)                 # (b*h*w,), num_codebooks == 1

    # codebook usage: emulates the 65536-slot zero-init buffer (unique count of
    # {0} ∪ indices) with a 256-bin histogram instead of a 64K sort.
    # TODO(synk): the torch codebook_used buffer is stateful across calls; here
    # it is emulated per-call in plain JAX glue, not in-kernel.
    hist = jnp.zeros((N_E,), jnp.int32).at[indices].add(1)
    n_unique = jnp.sum(hist > 0) + jnp.where(hist[0] == 0, 1, 0)
    codebook_usage = n_unique / N_E

    return (quantized_nchw,
            (commit_loss, entropy_aux_loss, codebook_usage),
            (None, None, indices))


if __name__ == "__main__":
    key = jax.random.PRNGKey(0)
    b, h, w = 2, 16, 16
    z = jax.random.normal(key, (b, DIM, h, w), dtype=jnp.float32)

    quantized, (commit_loss, entropy_aux_loss, codebook_usage), (_, _, indices) = \
        lfq_forward(z)
    jax.block_until_ready(
        (quantized, commit_loss, entropy_aux_loss, codebook_usage, indices))

    # --- lightweight correctness check vs pure-JAX reference ---
    zf = jnp.transpose(z, (0, 2, 3, 1)).reshape(-1, DIM).astype(jnp.float32)
    cb = build_codebook()
    q_r = jnp.where(zf > 0, 1.0, -1.0)
    idx_r = jnp.sum((q_r > 0).astype(jnp.int32)
                    * (2 ** jnp.arange(DIM, dtype=jnp.int32)), -1)
    logits_r = 2.0 * jnp.matmul(zf, cb.T, precision=jax.lax.Precision.HIGHEST)
    probs_r = jax.nn.softmax(logits_r / TEMPERATURE, -1)
    logp_r = jax.nn.log_softmax(logits_r / TEMPERATURE + EPS, -1)
    avg_probs_r = probs_r.mean(0)
    avg_ent_r = -jnp.sum(avg_probs_r * jnp.log(avg_probs_r + EPS))
    samp_ent_r = jnp.mean(-jnp.sum(probs_r * logp_r, -1))
    ent_aux_r = ENTROPY_LOSS_RATIO * (SAMPLE_MIN_W * samp_ent_r
                                      - BATCH_MAX_W * avg_ent_r)
    commit_r = BETA * jnp.mean((zf - q_r) ** 2)

    np.testing.assert_allclose(
        np.asarray(quantized),
        np.asarray(jnp.transpose(q_r.reshape(b, h, w, DIM), (0, 3, 1, 2))),
        atol=1e-6)
    np.testing.assert_array_equal(np.asarray(indices), np.asarray(idx_r))
    np.testing.assert_allclose(float(commit_loss), float(commit_r),
                               rtol=1e-4, atol=1e-6)
    np.testing.assert_allclose(float(entropy_aux_loss), float(ent_aux_r),
                               rtol=1e-3, atol=1e-4)

    print("KERNEL_OK")
</pallas_src>

<mosaic_0001>
module attributes {stable_mosaic.version = 11 : i64} {
  func.func @_lfq_kernel(%arg0: i32, %arg1: i32, %arg2: memref<1x8x256xf32, #tpu.memory_space<vmem>>, %arg3: memref<1x8x256xf32, #tpu.memory_space<vmem>>, %arg4: memref<1x1x256xi32, #tpu.memory_space<vmem>>, %arg5: memref<1x1x264x1xf32, #tpu.memory_space<vmem>>) attributes {dimension_semantics = [#tpu.dimension_semantics<parallel>, #tpu.dimension_semantics<parallel>], iteration_bounds = array<i64: 2, 1>, scalar_prefetch = 0 : i64, scratch_operands = 0 : i64, tpu.core_type = #tpu.core_type<tc>, window_params = [{transform_indices = @transform_0, window_bounds = array<i64: 1, 8, 256>}, {transform_indices = @transform_1, window_bounds = array<i64: 1, 8, 256>}, {transform_indices = @transform_2, window_bounds = array<i64: 1, 1, 256>}, {transform_indices = @transform_3, window_bounds = array<i64: 1, 1, 264, 1>}]} {
    %c0 = arith.constant 0 : index
    %c0_0 = arith.constant 0 : index
    %c0_1 = arith.constant 0 : index
    %0 = vector.load %arg2[%c0, %c0_0, %c0_1] : memref<1x8x256xf32, #tpu.memory_space<vmem>>, vector<1x8x256xf32>
    %1 = vector.shape_cast %0 : vector<1x8x256xf32> to vector<8x256xf32>
    %cst = arith.constant 0.000000e+00 : f32
    %2 = vector.broadcast %cst : f32 to vector<8x256xf32>
    %3 = arith.cmpf ogt, %1, %2 : vector<8x256xf32>
    %cst_2 = arith.constant 1.000000e+00 : f32
    %cst_3 = arith.constant -1.000000e+00 : f32
    %4 = vector.broadcast %cst_2 : f32 to vector<8x256xf32>
    %5 = vector.broadcast %cst_3 : f32 to vector<8x256xf32>
    %6 = arith.select %3, %4, %5 : vector<8x256xi1>, vector<8x256xf32>
    %c0_4 = arith.constant 0 : index
    %c0_5 = arith.constant 0 : index
    %c0_6 = arith.constant 0 : index
    %7 = vector.load %arg3[%c0_4, %c0_5, %c0_6] : memref<1x8x256xf32, #tpu.memory_space<vmem>>, vector<1x8x256xf32>
    %8 = vector.shape_cast %7 : vector<1x8x256xf32> to vector<8x256xf32>
    %9 = vector.shape_cast %6 : vector<8x256xf32> to vector<1x8x256xf32>
    tpu.vector_store %arg3[%c0_4, %c0_5, %c0_6], %9 {strides = array<i32>} : memref<1x8x256xf32, #tpu.memory_space<vmem>>, vector<1x8x256xf32>,
    %10 = vector.extract_strided_slice %3 {offsets = [0, 0], sizes = [1, 256], strides = [1, 1]} : vector<8x256xi1> to vector<1x256xi1>
    %11 = arith.extui %10 : vector<1x256xi1> to vector<1x256xi32>
    %12 = vector.extract_strided_slice %3 {offsets = [1, 0], sizes = [1, 256], strides = [1, 1]} : vector<8x256xi1> to vector<1x256xi1>
    %13 = arith.extui %12 : vector<1x256xi1> to vector<1x256xi32>
    %c2_i32 = arith.constant 2 : i32
    %14 = vector.broadcast %c2_i32 : i32 to vector<1x256xi32>
    %15 = arith.muli %13, %14 : vector<1x256xi32>
    %16 = arith.addi %11, %15 : vector<1x256xi32>
    %17 = vector.extract_strided_slice %3 {offsets = [2, 0], sizes = [1, 256], strides = [1, 1]} : vector<8x256xi1> to vector<1x256xi1>
    %18 = arith.extui %17 : vector<1x256xi1> to vector<1x256xi32>
    %c4_i32 = arith.constant 4 : i32
    %19 = vector.broadcast %c4_i32 : i32 to vector<1x256xi32>
    %20 = arith.muli %18, %19 : vector<1x256xi32>
    %21 = arith.addi %16, %20 : vector<1x256xi32>
    %22 = vector.extract_strided_slice %3 {offsets = [3, 0], sizes = [1, 256], strides = [1, 1]} : vector<8x256xi1> to vector<1x256xi1>
    %23 = arith.extui %22 : vector<1x256xi1> to vector<1x256xi32>
    %c8_i32 = arith.constant 8 : i32
    %24 = vector.broadcast %c8_i32 : i32 to vector<1x256xi32>
    %25 = arith.muli %23, %24 : vector<1x256xi32>
    %26 = arith.addi %21, %25 : vector<1x256xi32>
    %27 = vector.extract_strided_slice %3 {offsets = [4, 0], sizes = [1, 256], strides = [1, 1]} : vector<8x256xi1> to vector<1x256xi1>
    %28 = arith.extui %27 : vector<1x256xi1> to vector<1x256xi32>
    %c16_i32 = arith.constant 16 : i32
    %29 = vector.broadcast %c16_i32 : i32 to vector<1x256xi32>
    %30 = arith.muli %28, %29 : vector<1x256xi32>
    %31 = arith.addi %26, %30 : vector<1x256xi32>
    %32 = vector.extract_strided_slice %3 {offsets = [5, 0], sizes = [1, 256], strides = [1, 1]} : vector<8x256xi1> to vector<1x256xi1>
    %33 = arith.extui %32 : vector<1x256xi1> to vector<1x256xi32>
    %c32_i32 = arith.constant 32 : i32
    %34 = vector.broadcast %c32_i32 : i32 to vector<1x256xi32>
    %35 = arith.muli %33, %34 : vector<1x256xi32>
    %36 = arith.addi %31, %35 : vector<1x256xi32>
    %37 = vector.extract_strided_slice %3 {offsets = [6, 0], sizes = [1, 256], strides = [1, 1]} : vector<8x256xi1> to vector<1x256xi1>
    %38 = arith.extui %37 : vector<1x256xi1> to vector<1x256xi32>
    %c64_i32 = arith.constant 64 : i32
    %39 = vector.broadcast %c64_i32 : i32 to vector<1x256xi32>
    %40 = arith.muli %38, %39 : vector<1x256xi32>
    %41 = arith.addi %36, %40 : vector<1x256xi32>
    %42 = vector.extract_strided_slice %3 {offsets = [7, 0], sizes = [1, 256], strides = [1, 1]} : vector<8x256xi1> to vector<1x256xi1>
    %43 = arith.extui %42 : vector<1x256xi1> to vector<1x256xi32>
    %c128_i32 = arith.constant 128 : i32
    %44 = vector.broadcast %c128_i32 : i32 to vector<1x256xi32>
    %45 = arith.muli %43, %44 : vector<1x256xi32>
    %46 = arith.addi %41, %45 : vector<1x256xi32>
    %c0_7 = arith.constant 0 : index
    %c0_8 = arith.constant 0 : index
    %c0_9 = arith.constant 0 : index
    %47 = vector.load %arg4[%c0_7, %c0_8, %c0_9] : memref<1x1x256xi32, #tpu.memory_space<vmem>>, vector<1x1x256xi32>
    %48 = vector.shape_cast %47 : vector<1x1x256xi32> to vector<1x256xi32>
    %49 = vector.shape_cast %46 : vector<1x256xi32> to vector<1x1x256xi32>
    tpu.vector_store %arg4[%c0_7, %c0_8, %c0_9], %49 {strides = array<i32>} : memref<1x1x256xi32, #tpu.memory_space<vmem>>, vector<1x1x256xi32>,
    %50 = math.absf %1 : vector<8x256xf32>
    %cst_10 = arith.constant 4.000000e+02 : f32
    %51 = vector.broadcast %cst_10 : f32 to vector<8x256xf32>
    %52 = arith.mulf %50, %51 : vector<8x256xf32>
    %cst_11 = arith.constant 0.000000e+00 : f32
    %53 = vector.broadcast %cst_11 : f32 to vector<8x256xf32>
    %54 = arith.subf %53, %52 : vector<8x256xf32>
    %55 = math.exp %54 : vector<8x256xf32>
    %cst_12 = arith.constant 1.000000e+00 : f32
    %56 = vector.broadcast %cst_12 : f32 to vector<8x256xf32>
    %57 = arith.addf %56, %55 : vector<8x256xf32>
    %58 = arith.divf %55, %57 : vector<8x256xf32>
    %cst_13 = arith.constant 1.000000e+00 : f32
    %59 = vector.broadcast %cst_13 : f32 to vector<8x256xf32>
    %60 = arith.addf %59, %55 : vector<8x256xf32>
    %61 = math.log %60 : vector<8x256xf32>
    %62 = arith.mulf %52, %58 : vector<8x256xf32>
    %63 = arith.addf %61, %62 : vector<8x256xf32>
    %64 = vector.shape_cast %63 : vector<8x256xf32> to vector<1x8x256xf32>
    %cst_14 = arith.constant dense<0.000000e+00> : vector<1xf32>
    %65 = vector.multi_reduction <add>, %64, %cst_14 [1, 2] : vector<1x8x256xf32> to vector<1xf32>
    %66 = vector.shape_cast %65 : vector<1xf32> to vector<1x1x1xf32>
    %67 = vector.extract %66[0, 0, 0] : f32 from vector<1x1x1xf32>
    %68 = vector.broadcast %67 : f32 to vector<1x1xf32>
    %69 = arith.subf %1, %6 : vector<8x256xf32>
    %70 = arith.subf %1, %6 : vector<8x256xf32>
    %71 = arith.mulf %69, %70 : vector<8x256xf32>
    %72 = vector.shape_cast %71 : vector<8x256xf32> to vector<1x8x256xf32>
    %cst_15 = arith.constant dense<0.000000e+00> : vector<1xf32>
    %73 = vector.multi_reduction <add>, %72, %cst_15 [1, 2] : vector<1x8x256xf32> to vector<1xf32>
    %74 = vector.shape_cast %73 : vector<1xf32> to vector<1x1x1xf32>
    %75 = vector.extract %74[0, 0, 0] : f32 from vector<1x1x1xf32>
    %76 = vector.broadcast %75 : f32 to vector<1x1xf32>
    %cst_16 = arith.constant 1.000000e+00 : f32
    %77 = vector.broadcast %cst_16 : f32 to vector<8x256xf32>
    %78 = arith.subf %77, %58 : vector<8x256xf32>
    %79 = arith.select %3, %78, %58 : vector<8x256xi1>, vector<8x256xf32>
    %80 = tpu.iota {dimensions = array<i32: 0>} : vector<8x256xi32>
    %cst_17 = arith.constant 1.000000e+00 : f32
    %81 = vector.broadcast %cst_17 : f32 to vector<8x256xf32>
    %c0_i32 = arith.constant 0 : i32
    %82 = vector.broadcast %c0_i32 : i32 to vector<8x256xi32>
    %83 = arith.shrsi %80, %82 : vector<8x256xi32>
    %c1_i32 = arith.constant 1 : i32
    %84 = vector.broadcast %c1_i32 : i32 to vector<8x256xi32>
    %85 = arith.andi %83, %84 : vector<8x256xi32>
    %c1_i32_18 = arith.constant 1 : i32
    %86 = vector.broadcast %c1_i32_18 : i32 to vector<8x256xi32>
    %87 = arith.cmpi eq, %85, %86 : vector<8x256xi32>
    %88 = vector.extract_strided_slice %79 {offsets = [0, 0], sizes = [1, 256], strides = [1, 1]} : vector<8x256xf32> to vector<1x256xf32>
    %cst_19 = arith.constant 1.000000e+00 : f32
    %89 = vector.broadcast %cst_19 : f32 to vector<1x256xf32>
    %90 = arith.subf %89, %88 : vector<1x256xf32>
    %91 = vector.shape_cast %88 : vector<1x256xf32> to vector<1x256xf32>
    %92 = vector.broadcast %91 : vector<1x256xf32> to vector<8x256xf32>
    %93 = vector.shape_cast %90 : vector<1x256xf32> to vector<1x256xf32>
    %94 = vector.broadcast %93 : vector<1x256xf32> to vector<8x256xf32>
    %95 = arith.select %87, %92, %94 : vector<8x256xi1>, vector<8x256xf32>
    %96 = arith.mulf %81, %95 : vector<8x256xf32>
    %c1_i32_20 = arith.constant 1 : i32
    %97 = vector.broadcast %c1_i32_20 : i32 to vector<8x256xi32>
    %98 = arith.shrsi %80, %97 : vector<8x256xi32>
    %c1_i32_21 = arith.constant 1 : i32
    %99 = vector.broadcast %c1_i32_21 : i32 to vector<8x256xi32>
    %100 = arith.andi %98, %99 : vector<8x256xi32>
    %c1_i32_22 = arith.constant 1 : i32
    %101 = vector.broadcast %c1_i32_22 : i32 to vector<8x256xi32>
    %102 = arith.cmpi eq, %100, %101 : vector<8x256xi32>
    %103 = vector.extract_strided_slice %79 {offsets = [1, 0], sizes = [1, 256], strides = [1, 1]} : vector<8x256xf32> to vector<1x256xf32>
    %cst_23 = arith.constant 1.000000e+00 : f32
    %104 = vector.broadcast %cst_23 : f32 to vector<1x256xf32>
    %105 = arith.subf %104, %103 : vector<1x256xf32>
    %106 = vector.shape_cast %103 : vector<1x256xf32> to vector<1x256xf32>
    %107 = vector.broadcast %106 : vector<1x256xf32> to vector<8x256xf32>
    %108 = vector.shape_cast %105 : vector<1x256xf32> to vector<1x256xf32>
    %109 = vector.broadcast %108 : vector<1x256xf32> to vector<8x256xf32>
    %110 = arith.select %102, %107, %109 : vector<8x256xi1>, vector<8x256xf32>
    %111 = arith.mulf %96, %110 : vector<8x256xf32>
    %c2_i32_24 = arith.constant 2 : i32
    %112 = vector.broadcast %c2_i32_24 : i32 to vector<8x256xi32>
    %113 = arith.shrsi %80, %112 : vector<8x256xi32>
    %c1_i32_25 = arith.constant 1 : i32
    %114 = vector.broadcast %c1_i32_25 : i32 to vector<8x256xi32>
    %115 = arith.andi %113, %114 : vector<8x256xi32>
    %c1_i32_26 = arith.constant 1 : i32
    %116 = vector.broadcast %c1_i32_26 : i32 to vector<8x256xi32>
    %117 = arith.cmpi eq, %115, %116 : vector<8x256xi32>
    %118 = vector.extract_strided_slice %79 {offsets = [2, 0], sizes = [1, 256], strides = [1, 1]} : vector<8x256xf32> to vector<1x256xf32>
    %cst_27 = arith.constant 1.000000e+00 : f32
    %119 = vector.broadcast %cst_27 : f32 to vector<1x256xf32>
    %120 = arith.subf %119, %118 : vector<1x256xf32>
    %121 = vector.shape_cast %118 : vector<1x256xf32> to vector<1x256xf32>
    %122 = vector.broadcast %121 : vector<1x256xf32> to vector<8x256xf32>
    %123 = vector.shape_cast %120 : vector<1x256xf32> to vector<1x256xf32>
    %124 = vector.broadcast %123 : vector<1x256xf32> to vector<8x256xf32>
    %125 = arith.select %117, %122, %124 : vector<8x256xi1>, vector<8x256xf32>
    %126 = arith.mulf %111, %125 : vector<8x256xf32>
    %127 = vector.extract_strided_slice %79 {offsets = [3, 0], sizes = [1, 256], strides = [1, 1]} : vector<8x256xf32> to vector<1x256xf32>
    %cst_28 = arith.constant 1.000000e+00 : f32
    %128 = vector.broadcast %cst_28 : f32 to vector<1x256xf32>
    %129 = arith.subf %128, %127 : vector<1x256xf32>
    %130 = vector.broadcast %129 : vector<1x256xf32> to vector<8x256xf32>
    %131 = arith.mulf %126, %130 : vector<8x256xf32>
    %132 = vector.broadcast %127 : vector<1x256xf32> to vector<8x256xf32>
    %133 = arith.mulf %126, %132 : vector<8x256xf32>
    %134 = tpu.concatenate %131, %133 in 0 : vector<8x256xf32>, vector<8x256xf32> -> vector<16x256xf32>
    %135 = vector.extract_strided_slice %79 {offsets = [4, 0], sizes = [1, 256], strides = [1, 1]} : vector<8x256xf32> to vector<1x256xf32>
    %cst_29 = arith.constant 1.000000e+00 : f32
    %136 = vector.broadcast %cst_29 : f32 to vector<1x256xf32>
    %137 = arith.subf %136, %135 : vector<1x256xf32>
    %138 = vector.broadcast %137 : vector<1x256xf32> to vector<16x256xf32>
    %139 = arith.mulf %134, %138 : vector<16x256xf32>
    %140 = vector.broadcast %135 : vector<1x256xf32> to vector<16x256xf32>
    %141 = arith.mulf %134, %140 : vector<16x256xf32>
    %142 = tpu.concatenate %139, %141 in 0 : vector<16x256xf32>, vector<16x256xf32> -> vector<32x256xf32>
    %143 = vector.extract_strided_slice %79 {offsets = [5, 0], sizes = [1, 256], strides = [1, 1]} : vector<8x256xf32> to vector<1x256xf32>
    %cst_30 = arith.constant 1.000000e+00 : f32
    %144 = vector.broadcast %cst_30 : f32 to vector<1x256xf32>
    %145 = arith.subf %144, %143 : vector<1x256xf32>
    %146 = vector.broadcast %145 : vector<1x256xf32> to vector<32x256xf32>
    %147 = arith.mulf %142, %146 : vector<32x256xf32>
    %148 = vector.broadcast %143 : vector<1x256xf32> to vector<32x256xf32>
    %149 = arith.mulf %142, %148 : vector<32x256xf32>
    %150 = tpu.concatenate %147, %149 in 0 : vector<32x256xf32>, vector<32x256xf32> -> vector<64x256xf32>
    %151 = vector.extract_strided_slice %79 {offsets = [6, 0], sizes = [1, 256], strides = [1, 1]} : vector<8x256xf32> to vector<1x256xf32>
    %cst_31 = arith.constant 1.000000e+00 : f32
    %152 = vector.broadcast %cst_31 : f32 to vector<1x256xf32>
    %153 = arith.subf %152, %151 : vector<1x256xf32>
    %154 = vector.broadcast %153 : vector<1x256xf32> to vector<64x256xf32>
    %155 = arith.mulf %150, %154 : vector<64x256xf32>
    %156 = vector.broadcast %151 : vector<1x256xf32> to vector<64x256xf32>
    %157 = arith.mulf %150, %156 : vector<64x256xf32>
    %158 = tpu.concatenate %155, %157 in 0 : vector<64x256xf32>, vector<64x256xf32> -> vector<128x256xf32>
    %159 = vector.extract_strided_slice %79 {offsets = [7, 0], sizes = [1, 256], strides = [1, 1]} : vector<8x256xf32> to vector<1x256xf32>
    %cst_32 = arith.constant 1.000000e+00 : f32
    %160 = vector.broadcast %cst_32 : f32 to vector<1x256xf32>
    %161 = arith.subf %160, %159 : vector<1x256xf32>
    %162 = vector.broadcast %161 : vector<1x256xf32> to vector<128x256xf32>
    %163 = arith.mulf %158, %162 : vector<128x256xf32>
    %164 = vector.broadcast %159 : vector<1x256xf32> to vector<128x256xf32>
    %165 = arith.mulf %158, %164 : vector<128x256xf32>
    %166 = tpu.concatenate %163, %165 in 0 : vector<128x256xf32>, vector<128x256xf32> -> vector<256x256xf32>
    %cst_33 = arith.constant dense<0.000000e+00> : vector<256xf32>
    %167 = vector.multi_reduction <add>, %166, %cst_33 [1] : vector<256x256xf32> to vector<256xf32>
    %168 = vector.shape_cast %167 : vector<256xf32> to vector<256x1xf32>
    %169 = tpu.iota {dimensions = array<i32: 0>} : vector<8x1xi32>
    %c0_i32_34 = arith.constant 0 : i32
    %170 = vector.broadcast %c0_i32_34 : i32 to vector<8x1xi32>
    %171 = arith.cmpi eq, %169, %170 : vector<8x1xi32>
    %c1_i32_35 = arith.constant 1 : i32
    %172 = vector.broadcast %c1_i32_35 : i32 to vector<8x1xi32>
    %173 = arith.cmpi eq, %169, %172 : vector<8x1xi32>
    %cst_36 = arith.constant 0.000000e+00 : f32
    %174 = vector.shape_cast %76 : vector<1x1xf32> to vector<1x1xf32>
    %175 = vector.broadcast %174 : vector<1x1xf32> to vector<8x1xf32>
    %176 = vector.broadcast %cst_36 : f32 to vector<8x1xf32>
    %177 = arith.select %173, %175, %176 : vector<8x1xi1>, vector<8x1xf32>
    %178 = vector.shape_cast %68 : vector<1x1xf32> to vector<1x1xf32>
    %179 = vector.broadcast %178 : vector<1x1xf32> to vector<8x1xf32>
    %180 = arith.select %171, %179, %177 : vector<8x1xi1>, vector<8x1xf32>
    %181 = tpu.concatenate %168, %180 in 0 : vector<256x1xf32>, vector<8x1xf32> -> vector<264x1xf32>
    %c0_37 = arith.constant 0 : index
    %c0_38 = arith.constant 0 : index
    %c0_39 = arith.constant 0 : index
    %c0_40 = arith.constant 0 : index
    %182 = vector.load %arg5[%c0_37, %c0_38, %c0_39, %c0_40] : memref<1x1x264x1xf32, #tpu.memory_space<vmem>>, vector<1x1x264x1xf32>
    %183 = vector.shape_cast %182 : vector<1x1x264x1xf32> to vector<264x1xf32>
    %184 = vector.shape_cast %181 : vector<264x1xf32> to vector<1x1x264x1xf32>
    tpu.vector_store %arg5[%c0_37, %c0_38, %c0_39, %c0_40], %184 {strides = array<i32>} : memref<1x1x264x1xf32, #tpu.memory_space<vmem>>, vector<1x1x264x1xf32>,
    return
  }
  func.func @transform_0(%arg0: i32, %arg1: i32) -> (i32, i32, i32) {
    %c0_i32 = arith.constant 0 : i32
    %c0_i32_0 = arith.constant 0 : i32
    return %arg0, %c0_i32, %arg1 : i32, i32, i32
  }
  func.func @transform_1(%arg0: i32, %arg1: i32) -> (i32, i32, i32) {
    %c0_i32 = arith.constant 0 : i32
    %c0_i32_0 = arith.constant 0 : i32
    return %arg0, %c0_i32, %arg1 : i32, i32, i32
  }
  func.func @transform_2(%arg0: i32, %arg1: i32) -> (i32, i32, i32) {
    %c0_i32 = arith.constant 0 : i32
    %c0_i32_0 = arith.constant 0 : i32
    return %arg0, %c0_i32, %arg1 : i32, i32, i32
  }
  func.func @transform_3(%arg0: i32, %arg1: i32) -> (i32, i32, i32, i32) {
    %c0_i32 = arith.constant 0 : i32
    %c0_i32_0 = arith.constant 0 : i32
    %c0_i32_1 = arith.constant 0 : i32
    return %arg0, %arg1, %c0_i32, %c0_i32_0 : i32, i32, i32, i32
  }
}

</mosaic_0001>

<llo_original>
// kernel: tpu_custom_call.1
$region0: #{tpu_custom_call.1}
  #allocation0 [shape = 'u32[]', space=smem, size = 0x4, offset = 0x4, fixed_abs, tag = 'smem constant byte address 0x4 - core index']
  #allocation1 [shape = 'u32[72,128]{1,0:T(1,128)}', space=vmem, size = 0x9000, scoped, tag = 'internal scratch']
  %s0 = inlined_call_operand.hbm [shape: f32[2,8,256], index: 0, kind: input, shape index: {}]
  %s1 = inlined_call_operand.hbm [shape: f32[2,8,256], index: 1, kind: output, shape index: {0}]
  %s2 = inlined_call_operand.hbm [shape: s32[2,1,256], index: 2, kind: output, shape index: {1}]
  %s3 = inlined_call_operand.vmem [shape: f32[2,1,264,1], index: 3, kind: output, shape index: {2}]
  %4 = xla_tuple %s1, %s2, %s3
  %s5 = sld [smem:[#allocation0]]
  $region57: #{tpu_custom_call.1} parent=0
    _
  %s7 = ssub.s32 1, %s5
  %s8 = scalar_select 0, %s7, %s5
  $region1: #{tpu_custom_call.1} parent=0
    #allocation2 [shape = 'u8[16384]{0}', space=vmem, size = 0x4000, scoped, tag = 'input window, operand 0']
    #allocation3 [shape = 's32[2]{0}', space=sflag, size = 0x8, scoped, tag = 'scoped memory for tpu_custom_call.1']
    #allocation4 [shape = 's32[2]{0}', space=sflag, size = 0x8, scoped, tag = 'scoped memory for tpu_custom_call.1']
    #allocation5 [shape = 'u8[16384]{0}', space=vmem, size = 0x4000, scoped, tag = 'output window, operand 0']
    #allocation6 [shape = 'u8[2048]{0}', space=vmem, size = 0x800, scoped, tag = 'output window, operand 1']
    #allocation7 [shape = 's32[2]{0}', space=sflag, size = 0x8, scoped, tag = 'scoped memory for tpu_custom_call.1']
    %9 = vsyncpa [#allocation3], 0
    %s10 = scalar_lea.sflag [#allocation3], 1
    %11 = vsyncpa %s10, 0
    %12 = vsyncpa [#allocation4], 0
    %s13 = scalar_lea.sflag [#allocation4], 1
    %14 = vsyncpa %s13, 0
    %15 = vsyncpa [#allocation7], 0
    %s16 = scalar_lea.sflag [#allocation7], 1
    %17 = vsyncpa %s16, 0
    loop: start=0, step=1, limit=4
    $region2: #{tpu_custom_call.1} parent=1 // loop_pre_header
      _
    $region3: #{tpu_custom_call.1} parent=1 // loop_header
      %s19 = sphi 0, %s23
      %p20 = scmp.ge.s32.totalorder %s19, 4
      %s26 = sphi 0, %s38
      %s27 = sphi 0, %s34
      %s28 = sphi 0, %s26
      %s29 = sphi 0, %s27
      %s30 = sphi 0, %s28
      %s31 = sphi 0, %s29
      %s43 = sphi 0, %s45
      %s46 = sphi 0, %s43
      %s47 = sphi 0, %s46
      %s63 = sphi 0, %s47
      %s71 = sphi 0, %s73
      %s74 = sphi 0, %s71
      %s75 = sphi 0, %s74
      %s91 = sphi 0, %s75
      %s99 = sphi 0, %s101
      %s102 = sphi 0, %s99
      %s103 = sphi 0, %s102
      %s119 = sphi 0, %s103
      %s127 = sphi 0, %s129
      %s130 = sphi 0, %s127
      %s131 = sphi 0, %s130
      %s147 = sphi 0, %s131
    $region4: #{tpu_custom_call.1} parent=1 // loop_header_branch
      %22 = sbr.rel (%p20) target = $region8
    $region5: #{tpu_custom_call.1} parent=1 // loop_body
      %s24 = ssub.s32 %s19, 1
      %s25 = ssub.s32 %s19, 2
      %s32 = sadd.s32 1, %s27
      %p33 = scmp.ge.s32.totalorder %s32, 1
      %s34 = scalar_select %p33, 0, %s32
      %s35 = sadd.s32 1, %s26
      %s36 = scalar_select %p33, %s35, %s26
      %p37 = scmp.ge.s32.totalorder %s36, 2
      %s38 = scalar_select %p37, 0, %s36
      %s39 = ssub.s32 %s26, %s38
      %s40 = ssub.s32 %s27, %s34
      %s41 = sor.u32 %s39, %s40
      %p42 = scmp.eq.s32.totalorder %s41, 0
      %s44 = sadd.s32 %s43, 1
      %s45 = scalar_select %p42, %s43, %s44
      %p48 = pneg %p42
      %p49 = scmp.eq.s32.totalorder %s19, 1
      %p50 = por %p48, %p49
      %p51 = scmp.ne.s32.totalorder %s43, %s46
      %p52 = scmp.eq.s32.totalorder %s19, 0
      %p53 = por %p51, %p52
      %p54 = scmp.ne.s32.totalorder %s43, %s46
      %p55 = scmp.eq.s32.totalorder %s24, 1
      %p56 = por %p54, %p55
      %p57 = scmp.ne.s32.totalorder %s46, %s47
      %p58 = scmp.eq.s32.totalorder %s24, 0
      %p59 = por %p57, %p58
      %p60 = scmp.ne.s32.totalorder %s46, %s47
      %p61 = scmp.eq.s32.totalorder %s25, 1
      %p62 = por %p60, %p61
      %p64 = scmp.ne.s32.totalorder %s47, %s63
      %p65 = scmp.eq.s32.totalorder %s25, 0
      %p66 = por %p64, %p65
      %s67 = ssub.s32 %s26, %s38
      %s68 = ssub.s32 %s27, %s34
      %s69 = sor.u32 %s67, %s68
      %p70 = scmp.eq.s32.totalorder %s69, 0
      %s72 = sadd.s32 %s71, 1
      %s73 = scalar_select %p70, %s71, %s72
      %p76 = pneg %p70
      %p77 = scmp.eq.s32.totalorder %s19, 1
      %p78 = por %p76, %p77
      %p79 = scmp.ne.s32.totalorder %s71, %s74
      %p80 = scmp.eq.s32.totalorder %s19, 0
      %p81 = por %p79, %p80
      %p82 = scmp.ne.s32.totalorder %s71, %s74
      %p83 = scmp.eq.s32.totalorder %s24, 1
      %p84 = por %p82, %p83
      %p85 = scmp.ne.s32.totalorder %s74, %s75
      %p86 = scmp.eq.s32.totalorder %s24, 0
      %p87 = por %p85, %p86
      %p88 = scmp.ne.s32.totalorder %s74, %s75
      %p89 = scmp.eq.s32.totalorder %s25, 1
      %p90 = por %p88, %p89
      %p92 = scmp.ne.s32.totalorder %s75, %s91
      %p93 = scmp.eq.s32.totalorder %s25, 0
      %p94 = por %p92, %p93
      %s95 = ssub.s32 %s26, %s38
      %s96 = ssub.s32 %s27, %s34
      %s97 = sor.u32 %s95, %s96
      %p98 = scmp.eq.s32.totalorder %s97, 0
      %s100 = sadd.s32 %s99, 1
      %s101 = scalar_select %p98, %s99, %s100
      %p104 = pneg %p98
      %p105 = scmp.eq.s32.totalorder %s19, 1
      %p106 = por %p104, %p105
      %p107 = scmp.ne.s32.totalorder %s99, %s102
      %p108 = scmp.eq.s32.totalorder %s19, 0
      %p109 = por %p107, %p108
      %p110 = scmp.ne.s32.totalorder %s99, %s102
      %p111 = scmp.eq.s32.totalorder %s24, 1
      %p112 = por %p110, %p111
      %p113 = scmp.ne.s32.totalorder %s102, %s103
      %p114 = scmp.eq.s32.totalorder %s24, 0
      %p115 = por %p113, %p114
      %p116 = scmp.ne.s32.totalorder %s102, %s103
      %p117 = scmp.eq.s32.totalorder %s25, 1
      %p118 = por %p116, %p117
      %p120 = scmp.ne.s32.totalorder %s103, %s119
      %p121 = scmp.eq.s32.totalorder %s25, 0
      %p122 = por %p120, %p121
      %s123 = ssub.s32 %s26, %s38
      %s124 = ssub.s32 %s27, %s34
      %s125 = sor.u32 %s123, %s124
      %p126 = scmp.eq.s32.totalorder %s125, 0
      %s128 = sadd.s32 %s127, 1
      %s129 = scalar_select %p126, %s127, %s128
      %p132 = pneg %p126
      %p133 = scmp.eq.s32.totalorder %s19, 1
      %p134 = por %p132, %p133
      %p135 = scmp.ne.s32.totalorder %s127, %s130
      %p136 = scmp.eq.s32.totalorder %s19, 0
      %p137 = por %p135, %p136
      %p138 = scmp.ne.s32.totalorder %s127, %s130
      %p139 = scmp.eq.s32.totalorder %s24, 1
      %p140 = por %p138, %p139
      %p141 = scmp.ne.s32.totalorder %s130, %s131
      %p142 = scmp.eq.s32.totalorder %s24, 0
      %p143 = por %p141, %p142
      %p144 = scmp.ne.s32.totalorder %s130, %s131
      %p145 = scmp.eq.s32.totalorder %s25, 1
      %p146 = por %p144, %p145
      %p148 = scmp.ne.s32.totalorder %s131, %s147
      %p149 = scmp.eq.s32.totalorder %s25, 0
      %p150 = por %p148, %p149
      %p151 = scmp.le.s32.totalorder 1, %s19
      %p152 = scmp.lt.s32.totalorder %s19, 3
      %p153 = pnand %p151, %p152
      %p154 = pneg %p153
      // Predicated region
      $region9: #{tpu_custom_call.1} parent=5 // pred_check
        _
      $region10: #{tpu_custom_call.1} parent=5 // pred_check_branch
        %156 = sbr.rel (%p153) target = $region12
      $region11: #{tpu_custom_call.1} parent=5 // pred_region
        %s157 = ssub.s32 %s19, 1
      $region12: #{tpu_custom_call.1} parent=5 // pred_fallthru
        _
      %p158 = scmp.lt.s32.totalorder %s19, 2
      // Predicated region
      $region13: #{tpu_custom_call.1} parent=5 // pred_check
        %p159 = pneg %p158
      $region14: #{tpu_custom_call.1} parent=5 // pred_check_branch
        %161 = sbr.rel (%p159) target = $region16
      $region15: #{tpu_custom_call.1} parent=5 // pred_region
        // Predicated region
        $region17: #{tpu_custom_call.1} parent=15 // pred_check
          %p162 = pneg %p53
        $region18: #{tpu_custom_call.1} parent=15 // pred_check_branch
          %164 = sbr.rel (%p162) target = $region20
        $region19: #{tpu_custom_call.1} parent=15 // pred_region
          %s165 = sand.u32 %s43, 1
          %s166 = scalar_lea.sflag [#allocation3], %s165
          %s167 = sand.u32 %s43, 1
          %s168 = smul.addr %s167, 16
          %s169 = scalar_lea.vmem [#allocation2], %s168
          %s170 = smul.u32 2, %s27
          %172 = vsyncadd %s166, 0
          %s173 = smul.addr %s26, 2
          %s174 = sadd.s32 %s170, %s173
          %s175 = smul.addr %s174, 8
          %s176 = scalar_lea.hbm %s0, %s175
          %s178 = sshll.u32 %s176, 4
          %s179 = int_to_ptr.hbm [resolvable:$true] %s178
          %s180 = sshll.u32 %s169, 4
          %s181 = int_to_ptr.vmem [resolvable:$true] %s180
          %183 = dma.hbm_to_vmem [thread:$0]  %s179, 256, %s181, %s166
        $region20: #{tpu_custom_call.1} parent=15 // pred_fallthru
          _
      $region16: #{tpu_custom_call.1} parent=5 // pred_fallthru
        _
      %p184 = scmp.le.s32.totalorder 1, %s19
      %p185 = scmp.lt.s32.totalorder %s19, 3
      %p186 = pnand %p184, %p185
      %p187 = pneg %p186
      // Predicated region
      $region21: #{tpu_custom_call.1} parent=5 // pred_check
        _
      $region22: #{tpu_custom_call.1} parent=5 // pred_check_branch
        %189 = sbr.rel (%p186) target = $region24
      $region23: #{tpu_custom_call.1} parent=5 // pred_region
        %s190 = ssub.s32 %s19, 1
        %s191 = sand.u32 %s46, 1
        %s192 = scalar_lea.sflag [#allocation3], %s191
        %s193 = sand.u32 %s46, 1
        %s194 = smul.addr %s193, 16
        %s195 = scalar_lea.vmem [#allocation2], %s194
        // Predicated region
        $region25: #{tpu_custom_call.1} parent=23 // pred_check
          %p196 = pneg %p59
        $region26: #{tpu_custom_call.1} parent=23 // pred_check_branch
          %198 = sbr.rel (%p196) target = $region28
        $region27: #{tpu_custom_call.1} parent=23 // pred_region
          %200 = dma.done %s192, 256
        $region28: #{tpu_custom_call.1} parent=23 // pred_fallthru
          _
        %s201 = sand.u32 %s46, 1
        %s202 = scalar_lea.sflag [#allocation3], %s201
        %s203 = sand.u32 %s46, 1
        %s204 = smul.addr %s203, 16
        %s205 = scalar_lea.vmem [#allocation2], %s204
        %p206 = pneg %p59
        %p207 = pneg %p56
        %p208 = pneg %p87
        %p209 = pneg %p84
        %s210 = sand.u32 %s74, 1
        %s211 = scalar_lea.sflag [#allocation4], %s210
        %s212 = sand.u32 %s74, 1
        %s213 = smul.addr %s212, 16
        %s214 = scalar_lea.vmem [#allocation5], %s213
        %p215 = pneg %p115
        %p216 = pneg %p112
        %s217 = sand.u32 %s102, 1
        %s218 = scalar_lea.sflag [#allocation7], %s217
        %s219 = sand.u32 %s102, 1
        %s220 = smul.addr %s219, 2
        %s221 = scalar_lea.vmem [#allocation6], %s220
        %p222 = pneg %p143
        %p223 = pneg %p140
        %p224 = scmp.lt.s32.totalorder %s28, 1
        %s225 = scalar_select %p224, %s28, 1
        %p226 = scmp.lt.s32.totalorder %s29, 0
        %s227 = scalar_select %p226, %s29, 0
        %s228 = smul.addr %s227, 33
        %s229 = smul.addr %s225, 33
        %s230 = sadd.s32 %s228, %s229
        %s231 = smul.addr %s230, 8
        %s232 = scalar_lea.vmem %s3, %s231
        %s233 = smul.u32 2, %s29
        %s234 = smul.u32 2, %s29
        %s235 = smul.u32 2, %s29
        %p236 = scmp.lt.s32.totalorder %s28, 1
        %s237 = scalar_select %p236, %s28, 1
        %p238 = scmp.lt.s32.totalorder %s29, 0
        %s239 = scalar_select %p238, %s29, 0
        %s240 = smul.addr %s239, 33
        %s241 = smul.addr %s237, 33
        %s242 = sadd.s32 %s240, %s241
        %s243 = smul.addr %s242, 8
        %s244 = scalar_lea.vmem %s3, %s243
        %v245 = vld [vmem:[%s195] sm:$0xff]
        %v246 = vld [vmem:[%s195 + $0x8] sm:$0xff]
        %vm247 = vcmp.gt.f32.partialorder %v245, 0.0
        %vm248 = vcmp.gt.f32.partialorder %v246, 0.0
        %v249 = vsel %vm247, 1.0, -1.0
        %v250 = vsel %vm248, 1.0, -1.0
        %251 = vst [vmem:[%s214] sm:$0xff] %v249
        %252 = vst [vmem:[%s214 + $0x8] sm:$0xff] %v250
        %v253 = vsel %vm247, 1, 0
        %v254 = vsel %vm248, 1, 0
        %v255 = vmul.u32 %v253, 2
        %v256 = vmul.u32 %v254, 2
        %v257 = vrot.slane %v255, 1
        %v258 = vrot.slane %v256, 1
        %v259 = vadd.s32 %v253, %v257
        %v260 = vadd.s32 %v254, %v258
        %v261 = vmul.u32 %v253, 4
        %v262 = vmul.u32 %v254, 4
        %v263 = vrot.slane %v261, 2
        %v264 = vrot.slane %v262, 2
        %v265 = vadd.s32 %v259, %v263
        %v266 = vadd.s32 %v260, %v264
        %v267 = vmul.u32 %v253, 8
        %v268 = vmul.u32 %v254, 8
        %v269 = vrot.slane %v267, 3
        %v270 = vrot.slane %v268, 3
        %v271 = vadd.s32 %v265, %v269
        %v272 = vadd.s32 %v266, %v270
        %v273 = vmul.u32 %v253, 16
        %v274 = vmul.u32 %v254, 16
        %v275 = vrot.slane %v273, 4
        %v276 = vrot.slane %v274, 4
        %v277 = vadd.s32 %v271, %v275
        %v278 = vadd.s32 %v272, %v276
        %v279 = vmul.u32 %v253, 32
        %v280 = vmul.u32 %v254, 32
        %v281 = vrot.slane %v279, 5
        %v282 = vrot.slane %v280, 5
        %v283 = vadd.s32 %v277, %v281
        %v284 = vadd.s32 %v278, %v282
        %v285 = vmul.u32 %v253, 64
        %v286 = vmul.u32 %v254, 64
        %v287 = vrot.slane %v285, 6
        %v288 = vrot.slane %v286, 6
        %v289 = vadd.s32 %v283, %v287
        %v290 = vadd.s32 %v284, %v288
        %v291 = vmul.u32 %v253, 128
        %v292 = vmul.u32 %v254, 128
        %v293 = vrot.slane %v291, 7
        %v294 = vrot.slane %v292, 7
        %v295 = vadd.s32 %v289, %v293
        %v296 = vadd.s32 %v290, %v294
        %v297 = vrot.slane %v296, 7
        %vm298 = vcmask 1040384
        %v299 = vsel %vm298, %v295, %v297
        %v300 = vlaneseq
        %vm301 = vcmp.ge.s32.totalorder %v300, 0
        %vm302 = vcmp.lt.s32.totalorder %v300, 256
        %vm303 = vmand %vm301, %vm302
        %304 = vst.msk [vmem:[%s221] sm:$0x3] %vm303, %v299
        %v305 = vand.u32 2147483647, %v245
        %v306 = vand.u32 2147483647, %v246
        %v307 = vmul.f32 %v305, 400.0
        %v308 = vmul.f32 %v306, 400.0
        %v309 = vsub.f32 0.0, %v307
        %v310 = vsub.f32 0.0, %v308
        %v311 = vmul.f32 %v309, 1.442695
        %v312 = vpow.pop %v311
        %v313 = vmul.f32 %v310, 1.442695
        %v314 = vpow.pop %v313
        %v315 = vadd.f32 %v312, 1.0
        %v316 = vadd.f32 %v314, 1.0
        %v317 = vrcp.pop %v315
        %v318 = vmul.f32 %v315, %v317
        %v319 = vsub.f32 1.0, %v318
        %v320 = vmul.f32 %v317, %v319
        %v321 = vadd.f32 %v317, %v320
        %vm322 = vweird.f32 %v315
        %vm323 = vweird.f32 %v317
        %vm324 = vmor %vm322, %vm323
        %v325 = vsel %vm324, %v317, %v321
        %v326 = vand.u32 2147483647, %v315
        %vm327 = vcmp.eq.f32.partialorder %v326, 8.507059e+37
        %v328 = vand.u32 %v315, 2147483648
        %v329 = vor.u32 1.1754944e-38, %v328
        %v330 = vsel %vm327, %v329, %v325
        %v331 = vmul.f32 %v312, %v330
        %v332 = vrcp.pop %v316
        %v333 = vmul.f32 %v316, %v332
        %v334 = vsub.f32 1.0, %v333
        %v335 = vmul.f32 %v332, %v334
        %v336 = vadd.f32 %v332, %v335
        %vm337 = vweird.f32 %v316
        %vm338 = vweird.f32 %v332
        %vm339 = vmor %vm337, %vm338
        %v340 = vsel %vm339, %v332, %v336
        %v341 = vand.u32 2147483647, %v316
        %vm342 = vcmp.eq.f32.partialorder %v341, 8.507059e+37
        %v343 = vand.u32 %v316, 2147483648
        %v344 = vor.u32 1.1754944e-38, %v343
        %v345 = vsel %vm342, %v344, %v340
        %v346 = vmul.f32 %v314, %v345
        %v347 = vlog2.pop %v315
        %v348 = vmul.f32 %v347, 0.6931472
        %v349 = vlog2.pop %v316
        %v350 = vmul.f32 %v349, 0.6931472
        %v351 = vmul.f32 %v307, %v331
        %v352 = vmul.f32 %v308, %v346
        %v353 = vadd.f32 %v348, %v351
        %v354 = vadd.f32 %v350, %v352
        %v355 = vadd.f32 %v353, %v354
        %356 = vadd.xlane.f32.xlu0 %v355
        %v357 = vpop.xlane.xlu0 %356
        %v358 = vrot.slane %v357, 4
        %v359 = vadd.f32 %v357, %v358
        %v360 = vrot.slane %v359, 2
        %v361 = vadd.f32 %v359, %v360
        %v362 = vrot.slane %v361, 1
        %v363 = vadd.f32 %v361, %v362
        %s364 = vtos %v363
        %v365 = vsub.f32 %v245, %v249
        %v366 = vsub.f32 %v246, %v250
        %v367 = vmul.f32 %v365, %v365
        %v368 = vmul.f32 %v366, %v366
        %v369 = vadd.f32 %v367, %v368
        %370 = vadd.xlane.f32.xlu0 %v369
        %v371 = vpop.xlane.xlu0 %370
        %v372 = vrot.slane %v371, 4
        %v373 = vadd.f32 %v371, %v372
        %v374 = vrot.slane %v373, 2
        %v375 = vadd.f32 %v373, %v374
        %v376 = vrot.slane %v375, 1
        %v377 = vadd.f32 %v375, %v376
        %s378 = vtos %v377
        %v379 = vsub.f32 1.0, %v331
        %v380 = vsub.f32 1.0, %v346
        %v381 = vsel %vm247, %v379, %v331
        %v382 = vsel %vm248, %v380, %v346
        %v383 = vlaneseq
        %v384 = vshrl.u32 %v383, 7
        %v385 = vand.u32 %v384, 1
        %vm386 = vcmp.eq.s32.totalorder %v385, 1
        %v387 = vsub.f32 1.0, %v381
        %v388 = vsub.f32 1.0, %v382
        %v389 = vperm.slane %v381, 0
        %v390 = vperm.slane %v382, 0
        %v391 = vperm.slane %v387, 0
        %v392 = vperm.slane %v388, 0
        %v393 = vsel %vm386, %v389, %v391
        %v394 = vsel %vm386, %v390, %v392
        %v395 = vshra.s32 %v384, 1
        %v396 = vand.u32 %v395, 1
        %vm397 = vcmp.eq.s32.totalorder %v396, 1
        %v398 = vperm.slane %v381, 1
        %v399 = vperm.slane %v382, 1
        %v400 = vperm.slane %v387, 1
        %v401 = vperm.slane %v388, 1
        %v402 = vsel %vm397, %v398, %v400
        %v403 = vsel %vm397, %v399, %v401
        %v404 = vmul.f32 %v393, %v402
        %v405 = vmul.f32 %v394, %v403
        %v406 = vshra.s32 %v384, 2
        %v407 = vand.u32 %v406, 1
        %vm408 = vcmp.eq.s32.totalorder %v407, 1
        %v409 = vperm.slane %v381, 2
        %v410 = vperm.slane %v382, 2
        %v411 = vperm.slane %v387, 2
        %v412 = vperm.slane %v388, 2
        %v413 = vsel %vm408, %v409, %v411
        %v414 = vsel %vm408, %v410, %v412
        %v415 = vmul.f32 %v404, %v413
        %v416 = vmul.f32 %v405, %v414
        %v417 = vperm.slane %v387, 3
        %v418 = vperm.slane %v388, 3
        %v419 = vmul.f32 %v415, %v417
        %v420 = vmul.f32 %v416, %v418
        %v421 = vperm.slane %v381, 3
        %v422 = vperm.slane %v382, 3
        %v423 = vmul.f32 %v415, %v421
        %v424 = vmul.f32 %v416, %v422
        %v425 = vperm.slane %v387, 4
        %v426 = vperm.slane %v388, 4
        %v427 = vmul.f32 %v419, %v425
        %v428 = vmul.f32 %v420, %v426
        %v429 = vmul.f32 %v423, %v425
        %v430 = vmul.f32 %v424, %v426
        %v431 = vperm.slane %v381, 4
        %v432 = vperm.slane %v382, 4
        %v433 = vmul.f32 %v419, %v431
        %v434 = vmul.f32 %v420, %v432
        %v435 = vmul.f32 %v423, %v431
        %v436 = vmul.f32 %v424, %v432
        %v437 = vperm.slane %v387, 5
        %v438 = vperm.slane %v388, 5
        %v439 = vmul.f32 %v427, %v437
        %v440 = vmul.f32 %v428, %v438
        %v441 = vmul.f32 %v429, %v437
        %v442 = vmul.f32 %v430, %v438
        %v443 = vmul.f32 %v433, %v437
        %v444 = vmul.f32 %v434, %v438
        %v445 = vmul.f32 %v435, %v437
        %v446 = vmul.f32 %v436, %v438
        %v447 = vperm.slane %v381, 5
        %v448 = vperm.slane %v382, 5
        %v449 = vmul.f32 %v427, %v447
        %v450 = vmul.f32 %v428, %v448
        %v451 = vmul.f32 %v429, %v447
        %v452 = vmul.f32 %v430, %v448
        %v453 = vmul.f32 %v433, %v447
        %v454 = vmul.f32 %v434, %v448
        %v455 = vmul.f32 %v435, %v447
        %v456 = vmul.f32 %v436, %v448
        %v457 = vperm.slane %v387, 6
        %v458 = vperm.slane %v388, 6
        %v459 = vmul.f32 %v439, %v457
        %v460 = vmul.f32 %v440, %v458
        %v461 = vmul.f32 %v441, %v457
        %v462 = vmul.f32 %v442, %v458
        %v463 = vmul.f32 %v443, %v457
        %v464 = vmul.f32 %v444, %v458
        %v465 = vmul.f32 %v445, %v457
        %v466 = vmul.f32 %v446, %v458
        %v467 = vmul.f32 %v449, %v457
        %v468 = vmul.f32 %v450, %v458
        %v469 = vmul.f32 %v451, %v457
        %v470 = vmul.f32 %v452, %v458
        %v471 = vmul.f32 %v453, %v457
        %v472 = vmul.f32 %v454, %v458
        %v473 = vmul.f32 %v455, %v457
        %v474 = vmul.f32 %v456, %v458
        %v475 = vperm.slane %v381, 6
        %v476 = vperm.slane %v382, 6
        %v477 = vmul.f32 %v439, %v475
        %v478 = vmul.f32 %v440, %v476
        %v479 = vmul.f32 %v441, %v475
        %v480 = vmul.f32 %v442, %v476
        %v481 = vmul.f32 %v443, %v475
        %v482 = vmul.f32 %v444, %v476
        %v483 = vmul.f32 %v445, %v475
        %v484 = vmul.f32 %v446, %v476
        %v485 = vmul.f32 %v449, %v475
        %v486 = vmul.f32 %v450, %v476
        %v487 = vmul.f32 %v451, %v475
        %v488 = vmul.f32 %v452, %v476
        %v489 = vmul.f32 %v453, %v475
        %v490 = vmul.f32 %v454, %v476
        %v491 = vmul.f32 %v455, %v475
        %v492 = vmul.f32 %v456, %v476
        %v493 = vperm.slane %v387, 7
        %v494 = vperm.slane %v388, 7
        %v495 = vmul.f32 %v459, %v493
        %v496 = vmul.f32 %v460, %v494
        %v497 = vmul.f32 %v461, %v493
        %v498 = vmul.f32 %v462, %v494
        %v499 = vmul.f32 %v463, %v493
        %v500 = vmul.f32 %v464, %v494
        %v501 = vmul.f32 %v465, %v493
        %v502 = vmul.f32 %v466, %v494
        %v503 = vmul.f32 %v467, %v493
        %v504 = vmul.f32 %v468, %v494
        %v505 = vmul.f32 %v469, %v493
        %v506 = vmul.f32 %v470, %v494
        %v507 = vmul.f32 %v471, %v493
        %v508 = vmul.f32 %v472, %v494
        %v509 = vmul.f32 %v473, %v493
        %v510 = vmul.f32 %v474, %v494
        %v511 = vmul.f32 %v477, %v493
        %v512 = vmul.f32 %v478, %v494
        %v513 = vmul.f32 %v479, %v493
        %v514 = vmul.f32 %v480, %v494
        %v515 = vmul.f32 %v481, %v493
        %v516 = vmul.f32 %v482, %v494
        %v517 = vmul.f32 %v483, %v493
        %v518 = vmul.f32 %v484, %v494
        %v519 = vmul.f32 %v485, %v493
        %v520 = vmul.f32 %v486, %v494
        %v521 = vmul.f32 %v487, %v493
        %v522 = vmul.f32 %v488, %v494
        %v523 = vmul.f32 %v489, %v493
        %v524 = vmul.f32 %v490, %v494
        %v525 = vmul.f32 %v491, %v493
        %v526 = vmul.f32 %v492, %v494
        %v527 = vperm.slane %v381, 7
        %v528 = vperm.slane %v382, 7
        %v529 = vmul.f32 %v459, %v527
        %v530 = vmul.f32 %v460, %v528
        %v531 = vmul.f32 %v461, %v527
        %v532 = vmul.f32 %v462, %v528
        %v533 = vmul.f32 %v463, %v527
        %v534 = vmul.f32 %v464, %v528
        %v535 = vmul.f32 %v465, %v527
        %v536 = vmul.f32 %v466, %v528
        %v537 = vmul.f32 %v467, %v527
        %v538 = vmul.f32 %v468, %v528
        %v539 = vmul.f32 %v469, %v527
        %v540 = vmul.f32 %v470, %v528
        %v541 = vmul.f32 %v471, %v527
        %v542 = vmul.f32 %v472, %v528
        %v543 = vmul.f32 %v473, %v527
        %v544 = vmul.f32 %v474, %v528
        %v545 = vmul.f32 %v477, %v527
        %v546 = vmul.f32 %v478, %v528
        %v547 = vmul.f32 %v479, %v527
        %v548 = vmul.f32 %v480, %v528
        %v549 = vmul.f32 %v481, %v527
        %v550 = vmul.f32 %v482, %v528
        %v551 = vmul.f32 %v483, %v527
        %v552 = vmul.f32 %v484, %v528
        %v553 = vmul.f32 %v485, %v527
        %v554 = vmul.f32 %v486, %v528
        %v555 = vmul.f32 %v487, %v527
        %v556 = vmul.f32 %v488, %v528
        %v557 = vmul.f32 %v489, %v527
        %v558 = vmul.f32 %v490, %v528
        %v559 = vmul.f32 %v491, %v527
        %v560 = vmul.f32 %v492, %v528
        %v561 = vadd.f32 %v495, %v496
        %562 = vadd.xlane.f32.xlu0 %v561
        %v563 = vpop.xlane.xlu0 %562
        %v564 = vadd.f32 %v497, %v498
        %565 = vadd.xlane.f32.xlu0 %v564
        %v566 = vpop.xlane.xlu0 %565
        %v567 = vadd.f32 %v499, %v500
        %568 = vadd.xlane.f32.xlu0 %v567
        %v569 = vpop.xlane.xlu0 %568
        %v570 = vadd.f32 %v501, %v502
        %571 = vadd.xlane.f32.xlu0 %v570
        %v572 = vpop.xlane.xlu0 %571
        %v573 = vadd.f32 %v503, %v504
        %574 = vadd.xlane.f32.xlu0 %v573
        %v575 = vpop.xlane.xlu0 %574
        %v576 = vadd.f32 %v505, %v506
        %577 = vadd.xlane.f32.xlu0 %v576
        %v578 = vpop.xlane.xlu0 %577
        %v579 = vadd.f32 %v507, %v508
        %580 = vadd.xlane.f32.xlu0 %v579
        %v581 = vpop.xlane.xlu0 %580
        %v582 = vadd.f32 %v509, %v510
        %583 = vadd.xlane.f32.xlu0 %v582
        %v584 = vpop.xlane.xlu0 %583
        %v585 = vadd.f32 %v511, %v512
        %586 = vadd.xlane.f32.xlu0 %v585
        %v587 = vpop.xlane.xlu0 %586
        %v588 = vadd.f32 %v513, %v514
        %589 = vadd.xlane.f32.xlu0 %v588
        %v590 = vpop.xlane.xlu0 %589
        %v591 = vadd.f32 %v515, %v516
        %592 = vadd.xlane.f32.xlu0 %v591
        %v593 = vpop.xlane.xlu0 %592
        %v594 = vadd.f32 %v517, %v518
        %595 = vadd.xlane.f32.xlu0 %v594
        %v596 = vpop.xlane.xlu0 %595
        %v597 = vadd.f32 %v519, %v520
        %598 = vadd.xlane.f32.xlu0 %v597
        %v599 = vpop.xlane.xlu0 %598
        %v600 = vadd.f32 %v521, %v522
        %601 = vadd.xlane.f32.xlu0 %v600
        %v602 = vpop.xlane.xlu0 %601
        %v603 = vadd.f32 %v523, %v524
        %604 = vadd.xlane.f32.xlu0 %v603
        %v605 = vpop.xlane.xlu0 %604
        %v606 = vadd.f32 %v525, %v526
        %607 = vadd.xlane.f32.xlu0 %v606
        %v608 = vpop.xlane.xlu0 %607
        %v609 = vadd.f32 %v529, %v530
        %610 = vadd.xlane.f32.xlu0 %v609
        %v611 = vpop.xlane.xlu0 %610
        %v612 = vadd.f32 %v531, %v532
        %613 = vadd.xlane.f32.xlu0 %v612
        %v614 = vpop.xlane.xlu0 %613
        %v615 = vadd.f32 %v533, %v534
        %616 = vadd.xlane.f32.xlu0 %v615
        %v617 = vpop.xlane.xlu0 %616
        %v618 = vadd.f32 %v535, %v536
        %619 = vadd.xlane.f32.xlu0 %v618
        %v620 = vpop.xlane.xlu0 %619
        %v621 = vadd.f32 %v537, %v538
        %622 = vadd.xlane.f32.xlu0 %v621
        %v623 = vpop.xlane.xlu0 %622
        %v624 = vadd.f32 %v539, %v540
        %625 = vadd.xlane.f32.xlu0 %v624
        %v626 = vpop.xlane.xlu0 %625
        %v627 = vadd.f32 %v541, %v542
        %628 = vadd.xlane.f32.xlu0 %v627
        %v629 = vpop.xlane.xlu0 %628
        %v630 = vadd.f32 %v543, %v544
        %631 = vadd.xlane.f32.xlu0 %v630
        %v632 = vpop.xlane.xlu0 %631
        %v633 = vadd.f32 %v545, %v546
        %634 = vadd.xlane.f32.xlu0 %v633
        %v635 = vpop.xlane.xlu0 %634
        %v636 = vadd.f32 %v547, %v548
        %637 = vadd.xlane.f32.xlu0 %v636
        %v638 = vpop.xlane.xlu0 %637
        %v639 = vadd.f32 %v549, %v550
        %640 = vadd.xlane.f32.xlu0 %v639
        %v641 = vpop.xlane.xlu0 %640
        %v642 = vadd.f32 %v551, %v552
        %643 = vadd.xlane.f32.xlu0 %v642
        %v644 = vpop.xlane.xlu0 %643
        %v645 = vadd.f32 %v553, %v554
        %646 = vadd.xlane.f32.xlu0 %v645
        %v647 = vpop.xlane.xlu0 %646
        %v648 = vadd.f32 %v555, %v556
        %649 = vadd.xlane.f32.xlu0 %v648
        %v650 = vpop.xlane.xlu0 %649
        %v651 = vadd.f32 %v557, %v558
        %652 = vadd.xlane.f32.xlu0 %v651
        %v653 = vpop.xlane.xlu0 %652
        %v654 = vadd.f32 %v559, %v560
        %655 = vadd.xlane.f32.xlu0 %v654
        %v656 = vpop.xlane.xlu0 %655
        %vm657 = vcmp.eq.s32.totalorder %v384, 0
        %vm658 = vcmp.eq.s32.totalorder %v384, 1
        %v659 = vstv %s378
        %v660 = vsel %vm658, %v659, 0.0
        %v661 = vstv %s364
        %v662 = vsel %vm657, %v661, %v660
        %vm663 = vcmask 7168
        %664 = vst.msk [vmem:[%s244] sm:$0xff] %vm663, %v563
        %665 = vst.msk [vmem:[%s244 + $0x8] sm:$0xff] %vm663, %v566
        %666 = vst.msk [vmem:[%s244 + $0x10] sm:$0xff] %vm663, %v569
        %667 = vst.msk [vmem:[%s244 + $0x18] sm:$0xff] %vm663, %v572
        %668 = vst.msk [vmem:[%s244 + $0x20] sm:$0xff] %vm663, %v575
        %669 = vst.msk [vmem:[%s244 + $0x28] sm:$0xff] %vm663, %v578
        %670 = vst.msk [vmem:[%s244 + $0x30] sm:$0xff] %vm663, %v581
        %671 = vst.msk [vmem:[%s244 + $0x38] sm:$0xff] %vm663, %v584
        %672 = vst.msk [vmem:[%s244 + $0x40] sm:$0xff] %vm663, %v587
        %673 = vst.msk [vmem:[%s244 + $0x48] sm:$0xff] %vm663, %v590
        %674 = vst.msk [vmem:[%s244 + $0x50] sm:$0xff] %vm663, %v593
        %675 = vst.msk [vmem:[%s244 + $0x58] sm:$0xff] %vm663, %v596
        %676 = vst.msk [vmem:[%s244 + $0x60] sm:$0xff] %vm663, %v599
        %677 = vst.msk [vmem:[%s244 + $0x68] sm:$0xff] %vm663, %v602
        %678 = vst.msk [vmem:[%s244 + $0x70] sm:$0xff] %vm663, %v605
        %679 = vst.msk [vmem:[%s244 + $0x78] sm:$0xff] %vm663, %v608
        %680 = vst.msk [vmem:[%s244 + $0x80] sm:$0xff] %vm663, %v611
        %681 = vst.msk [vmem:[%s244 + $0x88] sm:$0xff] %vm663, %v614
        %682 = vst.msk [vmem:[%s244 + $0x90] sm:$0xff] %vm663, %v617
        %683 = vst.msk [vmem:[%s244 + $0x98] sm:$0xff] %vm663, %v620
        %684 = vst.msk [vmem:[%s244 + $0xa0] sm:$0xff] %vm663, %v623
        %685 = vst.msk [vmem:[%s244 + $0xa8] sm:$0xff] %vm663, %v626
        %686 = vst.msk [vmem:[%s244 + $0xb0] sm:$0xff] %vm663, %v629
        %687 = vst.msk [vmem:[%s244 + $0xb8] sm:$0xff] %vm663, %v632
        %688 = vst.msk [vmem:[%s244 + $0xc0] sm:$0xff] %vm663, %v635
        %689 = vst.msk [vmem:[%s244 + $0xc8] sm:$0xff] %vm663, %v638
        %690 = vst.msk [vmem:[%s244 + $0xd0] sm:$0xff] %vm663, %v641
        %691 = vst.msk [vmem:[%s244 + $0xd8] sm:$0xff] %vm663, %v644
        %692 = vst.msk [vmem:[%s244 + $0xe0] sm:$0xff] %vm663, %v647
        %693 = vst.msk [vmem:[%s244 + $0xe8] sm:$0xff] %vm663, %v650
        %694 = vst.msk [vmem:[%s244 + $0xf0] sm:$0xff] %vm663, %v653
        %695 = vst.msk [vmem:[%s244 + $0xf8] sm:$0xff] %vm663, %v656
        %696 = vst.msk [vmem:[%s244 + $0x100] sm:$0xff] %vm663, %v662
        %s697 = sand.u32 %s74, 1
        %s698 = scalar_lea.sflag [#allocation4], %s697
        %s699 = sand.u32 %s74, 1
        %s700 = smul.addr %s699, 16
        %s701 = scalar_lea.vmem [#allocation5], %s700
        %s702 = sand.u32 %s102, 1
        %s703 = scalar_lea.sflag [#allocation7], %s702
        %s704 = sand.u32 %s102, 1
        %s705 = smul.addr %s704, 2
        %s706 = scalar_lea.vmem [#allocation6], %s705
        %p707 = scmp.lt.s32.totalorder %s28, 1
        %s708 = scalar_select %p707, %s28, 1
        %p709 = scmp.lt.s32.totalorder %s29, 0
        %s710 = scalar_select %p709, %s29, 0
        %s711 = smul.addr %s710, 33
        %s712 = smul.addr %s708, 33
        %s713 = sadd.s32 %s711, %s712
        %s714 = smul.addr %s713, 8
        %s715 = scalar_lea.vmem %s3, %s714
        // Predicated region
        $region29: #{tpu_custom_call.1} parent=23 // pred_check
          %p716 = pneg %p84
        $region30: #{tpu_custom_call.1} parent=23 // pred_check_branch
          %718 = sbr.rel (%p716) target = $region32
        $region31: #{tpu_custom_call.1} parent=23 // pred_region
          %s719 = smul.u32 2, %s29
          %721 = vsyncadd %s698, 0
          %s722 = smul.addr %s28, 2
          %s723 = sadd.s32 %s719, %s722
          %s724 = smul.addr %s723, 8
          %s725 = scalar_lea.hbm %s1, %s724
          %s727 = sshll.u32 %s701, 4
          %s728 = int_to_ptr.vmem [resolvable:$true] %s727
          %s729 = sshll.u32 %s725, 4
          %s730 = int_to_ptr.hbm [resolvable:$true] %s729
          %732 = dma.vmem_to_hbm [thread:$0]  %s728, 256, %s730, %s698
        $region32: #{tpu_custom_call.1} parent=23 // pred_fallthru
          _
        // Predicated region
        $region33: #{tpu_custom_call.1} parent=23 // pred_check
          %p733 = pneg %p112
        $region34: #{tpu_custom_call.1} parent=23 // pred_check_branch
          %735 = sbr.rel (%p733) target = $region36
        $region35: #{tpu_custom_call.1} parent=23 // pred_region
          %s736 = smul.u32 2, %s29
          %738 = vsyncadd %s703, 0
          %s739 = smul.addr %s28, 2
          %s740 = sadd.s32 %s736, %s739
          %s741 = scalar_lea.hbm %s2, %s740
          %s743 = sshll.u32 %s706, 4
          %s744 = int_to_ptr.vmem [resolvable:$true] %s743
          %s745 = sshll.u32 %s741, 4
          %s746 = int_to_ptr.hbm [resolvable:$true] %s745
          %748 = dma.vmem_to_hbm [thread:$0]  %s744, 32, %s746, %s703
        $region36: #{tpu_custom_call.1} parent=23 // pred_fallthru
          _
        // Predicated region
        $region37: #{tpu_custom_call.1} parent=23 // pred_check
          %p749 = pneg %p140
        $region38: #{tpu_custom_call.1} parent=23 // pred_check_branch
          %751 = sbr.rel (%p749) target = $region40
        $region39: #{tpu_custom_call.1} parent=23 // pred_region
          _
        $region40: #{tpu_custom_call.1} parent=23 // pred_fallthru
          _
      $region24: #{tpu_custom_call.1} parent=5 // pred_fallthru
        _
      %p752 = scmp.le.s32.totalorder 2, %s19
      // Predicated region
      $region41: #{tpu_custom_call.1} parent=5 // pred_check
        %p753 = pneg %p752
      $region42: #{tpu_custom_call.1} parent=5 // pred_check_branch
        %755 = sbr.rel (%p753) target = $region44
      $region43: #{tpu_custom_call.1} parent=5 // pred_region
        %s756 = ssub.s32 %s19, 2
        // Predicated region
        $region45: #{tpu_custom_call.1} parent=43 // pred_check
          %p757 = pneg %p90
        $region46: #{tpu_custom_call.1} parent=43 // pred_check_branch
          %759 = sbr.rel (%p757) target = $region48
        $region47: #{tpu_custom_call.1} parent=43 // pred_region
          %s760 = sand.u32 %s75, 1
          %s761 = scalar_lea.sflag [#allocation4], %s760
          %s762 = sand.u32 %s75, 1
          %s763 = smul.addr %s762, 16
          %s764 = scalar_lea.vmem [#allocation5], %s763
          %766 = dma.done %s761, 256
        $region48: #{tpu_custom_call.1} parent=43 // pred_fallthru
          _
        // Predicated region
        $region49: #{tpu_custom_call.1} parent=43 // pred_check
          %p767 = pneg %p118
        $region50: #{tpu_custom_call.1} parent=43 // pred_check_branch
          %769 = sbr.rel (%p767) target = $region52
        $region51: #{tpu_custom_call.1} parent=43 // pred_region
          %s770 = sand.u32 %s103, 1
          %s771 = scalar_lea.sflag [#allocation7], %s770
          %s772 = sand.u32 %s103, 1
          %s773 = smul.addr %s772, 2
          %s774 = scalar_lea.vmem [#allocation6], %s773
          %776 = dma.done %s771, 32
        $region52: #{tpu_custom_call.1} parent=43 // pred_fallthru
          _
        // Predicated region
        $region53: #{tpu_custom_call.1} parent=43 // pred_check
          %p777 = pneg %p146
        $region54: #{tpu_custom_call.1} parent=43 // pred_check_branch
          %779 = sbr.rel (%p777) target = $region56
        $region55: #{tpu_custom_call.1} parent=43 // pred_region
          %p780 = scmp.lt.s32.totalorder %s30, 1
          %s781 = scalar_select %p780, %s30, 1
          %p782 = scmp.lt.s32.totalorder %s31, 0
          %s783 = scalar_select %p782, %s31, 0
          %s784 = smul.addr %s783, 33
          %s785 = smul.addr %s781, 33
          %s786 = sadd.s32 %s784, %s785
          %s787 = smul.addr %s786, 8
          %s788 = scalar_lea.vmem %s3, %s787
        $region56: #{tpu_custom_call.1} parent=43 // pred_fallthru
          _
      $region44: #{tpu_custom_call.1} parent=5 // pred_fallthru
        _
    $region6: #{tpu_custom_call.1} parent=1 // loop_footer
      %s23 = sadd.s32 1, %s19
    $region7: #{tpu_custom_call.1} parent=1 // loop_footer_branch
      %18 = sbr.rel target = $region3
    $region8: #{tpu_custom_call.1} parent=1 // loop_exit
      _
    %789 = vsyncpa [#allocation3], 1
    %s790 = scalar_lea.sflag [#allocation3], 1
    %791 = vsyncpa %s790, 1
    %792 = vsyncpa [#allocation4], 1
    %s793 = scalar_lea.sflag [#allocation4], 1
    %794 = vsyncpa %s793, 1
    %795 = vsyncpa [#allocation7], 1
    %s796 = scalar_lea.sflag [#allocation7], 1
    %797 = vsyncpa %s796, 1

</llo_original>
